<compile_context>
chip_gen: v6e
topology: v6e:2x2x1
jax: 0.10.0
libtpu: 0.0.40
codegen_flags: <defaults>
</compile_context>

<pallas_src>
import jax
import jax.numpy as jnp
from jax import lax
from jax.experimental import pallas as pl
from jax.experimental.pallas import tpu as pltpu


def _ntxent_kernel(tau_ref, a_ref, v_hbm, loss_ref, acc_ref,
                   vn_ref, stage_ref, dma_sem, lcol_ref, rdsum_ref, corr_ref):
    i = pl.program_id(0)
    tm = a_ref.shape[0]            # row-tile size
    B = vn_ref.shape[0]            # total batch (== number of logit columns)
    eps2 = jnp.float32(1e-24)      # F.normalize clamps ||x|| at 1e-12 -> sum-sq at 1e-24

    inv_tau = 1.0 / tau_ref[0, 0]  # f32 scalar from SMEM

    @pl.when(i == 0)
    def _init():
        lcol_ref[...] = jnp.zeros_like(lcol_ref)
        rdsum_ref[...] = jnp.zeros_like(rdsum_ref)
        corr_ref[...] = jnp.zeros_like(corr_ref)

        # Stream v HBM -> VMEM once, in row chunks, L2-normalize, keep resident as vn.
        # (No pipeline double-buffering of the whole (B, D) v on top of the scratch.)
        def fetch_chunk(c, carry):
            start = pl.multiple_of(c * tm, tm)
            cp = pltpu.make_async_copy(v_hbm.at[pl.ds(start, tm), :], stage_ref, dma_sem)
            cp.start()
            cp.wait()
            v = stage_ref[...].astype(jnp.float32)
            v_n = v * lax.rsqrt(jnp.maximum(jnp.sum(v * v, axis=-1, keepdims=True), eps2))
            vn_ref[pl.ds(start, tm), :] = v_n.astype(vn_ref.dtype)
            return carry

        lax.fori_loop(0, B // tm, fetch_chunk, 0)

    # Normalize current query (row) tile; fold 1/tau into the LHS; cast once for the MXU.
    a = a_ref[...].astype(jnp.float32)
    a_n = a * lax.rsqrt(jnp.maximum(jnp.sum(a * a, axis=-1, keepdims=True), eps2))
    a_m = (a_n * inv_tau).astype(vn_ref.dtype)                        # (tm, D)

    # Target (diagonal) logits from the resident normalized v — same rounded operands
    # as the MXU path, so diag matches the matching column of s to f32-accumulation ULPs.
    row0 = pl.multiple_of(i * tm, tm)
    vd_n = vn_ref[pl.ds(row0, tm), :].astype(jnp.float32)
    diag = jnp.sum(a_m.astype(jnp.float32) * vd_n, axis=-1, keepdims=True)   # (tm, 1)

    # Single MXU matmul; contract last dims of both operands (no transpose feed).
    s = lax.dot_general(a_m, vn_ref[...], (((1,), (1,)), ((), ())),
                        preferred_element_type=jnp.float32)           # (tm, B)

    # Single exp pass: |s| <= 1/tau  =>  exp(s - 1/tau) in (0, 1] — no online max needed.
    p = jnp.exp(s - inv_tau)                                          # (tm, B)
    lse_row = inv_tau + jnp.log(jnp.sum(p, axis=-1, keepdims=True))   # (tm, 1)

    # loss = 0.5*(sum lse_row + sum lse_col - 2*sum diag)/B ; fold the 2*diag in here.
    rdsum_ref[...] += jnp.sum(lse_row - 2.0 * diag, keepdims=True)

    # Column accumulator for logits_per_video == logits_per_audio.T.
    lcol_ref[...] += jnp.sum(p, axis=0, keepdims=True)

    # Accuracy: prediction is correct iff the diagonal attains the row max.
    # Tiny slack absorbs MXU-vs-VPU accumulation rounding of the diagonal entry.
    m_row = jnp.max(s, axis=-1, keepdims=True)
    tol = jnp.float32(1e-4) * inv_tau
    corr_ref[...] += jnp.sum((diag + tol >= m_row).astype(jnp.float32), keepdims=True)

    @pl.when(i == pl.num_programs(0) - 1)
    def _finalize():
        lse_col_sum = jnp.sum(inv_tau + jnp.log(lcol_ref[...]), keepdims=True)   # (1, 1)
        inv_b = jnp.float32(1.0 / B)
        loss_ref[...] = 0.5 * (rdsum_ref[...] + lse_col_sum) * inv_b
        acc_ref[...] = 100.0 * corr_ref[...] * inv_b


def ntxent_loss(a_inv, v_inv, tau, *, block_rows=256, mxu_dtype=None):
    """Pallas forward of LossFunction. Returns a dict like the PyTorch module."""
    B, D = a_inv.shape
    assert v_inv.shape == (B, D)

    # Row-tile size. v7x note: with 64 MiB VMEM/TC (32 MiB default scoped), for B >= 4K
    # use block_rows=128 (vs 256 on v5e/v6e) and raise vmem_limit_bytes if needed.
    tm = B if B <= block_rows else block_rows
    assert B % tm == 0, "batch must be divisible by the row tile"  # TODO(synk): pad ragged B

    # MXU operand dtype: bf16 when inputs are bf16 (f32 accumulation). Per perf review,
    # pass mxu_dtype=jnp.bfloat16 for f32 inputs with large D too (f32 MXU is emulated
    # multi-pass bf16, 3-8x slower issue rate); check the looser logits tolerance first.
    if mxu_dtype is None:
        mxu_dtype = jnp.bfloat16 if a_inv.dtype == jnp.bfloat16 else jnp.float32
    tau_arr = jnp.asarray(tau, jnp.float32).reshape(1, 1)

    loss, acc = pl.pallas_call(
        _ntxent_kernel,
        out_shape=(
            jax.ShapeDtypeStruct((1, 1), jnp.float32),
            jax.ShapeDtypeStruct((1, 1), jnp.float32),
        ),
        grid_spec=pltpu.PrefetchScalarGridSpec(
            num_scalar_prefetch=0,
            grid=(B // tm,),
            in_specs=[
                pl.BlockSpec(memory_space=pltpu.MemorySpace.SMEM),   # tau scalar
                pl.BlockSpec((tm, D), lambda i: (i, 0)),             # a rows (query tile)
                pl.BlockSpec(memory_space=pl.ANY),                   # v stays in HBM
            ],
            out_specs=(
                pl.BlockSpec((1, 1), lambda i: (0, 0)),              # loss
                pl.BlockSpec((1, 1), lambda i: (0, 0)),              # acc
            ),
            scratch_shapes=[
                pltpu.VMEM((B, D), mxu_dtype),        # normalized v, resident all steps
                pltpu.VMEM((tm, D), v_inv.dtype),     # staging buffer for v chunks
                pltpu.SemaphoreType.DMA,              # DMA completion semaphore
                pltpu.VMEM((1, B), jnp.float32),      # running column sum of exp(s - 1/tau)
                pltpu.VMEM((1, 1), jnp.float32),      # sum(lse_row - 2*diag)
                pltpu.VMEM((1, 1), jnp.float32),      # correct-prediction count
            ],
        ),
        compiler_params=pltpu.CompilerParams(
            # Column accumulators carry across row tiles -> reduction axis.
            dimension_semantics=("arbitrary",),
        ),
    )(tau_arr, a_inv, v_inv)

    loss = loss[0, 0]
    acc = acc[0, 0]
    return {"loss": loss, "inv_loss": loss, "inv_acc": acc, "acc": acc}


def _reference(a_inv, v_inv, tau):
    # pure-JAX reference mirroring the PyTorch forward (single device)
    def l2n(x):
        n = jnp.sqrt(jnp.sum(x * x, axis=-1, keepdims=True))
        return x / jnp.maximum(n, 1e-12)

    a = l2n(a_inv.astype(jnp.float32))
    v = l2n(v_inv.astype(jnp.float32))
    la = a @ v.T / tau
    lv = v @ a.T / tau
    labels = jnp.arange(a.shape[0])

    def ce(logits):
        lse = jax.scipy.special.logsumexp(logits, axis=-1)
        tgt = logits[jnp.arange(logits.shape[0]), labels]
        return jnp.mean(lse - tgt)

    loss = 0.5 * (ce(la) + ce(lv))
    acc = 100.0 * jnp.sum(jnp.argmax(la, axis=-1) == labels) / a.shape[0]
    return loss, acc


if __name__ == "__main__":
    # Deterministic parameter init (module __init__): tau = 0.07 when tau_inv == 0
    tau = 0.07

    # NOTE: at these toy sizes the kernel is dispatch-overhead bound; it pays off at large B.

    # Case 1: single row tile (grid = 1).
    B, D = 8, 32
    ka, kv = jax.random.split(jax.random.PRNGKey(0))
    a_inv = jax.random.normal(ka, (B, D), dtype=jnp.float32)
    v_inv = jax.random.normal(kv, (B, D), dtype=jnp.float32)
    out = ntxent_loss(a_inv, v_inv, tau)
    jax.block_until_ready(out)
    ref_loss, ref_acc = _reference(a_inv, v_inv, tau)
    assert jnp.allclose(out["loss"], ref_loss, atol=1e-4, rtol=1e-4), (out["loss"], ref_loss)
    assert jnp.allclose(out["acc"], ref_acc, atol=1e-4, rtol=1e-4), (out["acc"], ref_acc)

    # Case 2: multiple row tiles (exercises the streamed-v init and column accumulation).
    B2, D2 = 32, 32
    k2a, k2v = jax.random.split(jax.random.PRNGKey(1))
    a2 = jax.random.normal(k2a, (B2, D2), dtype=jnp.float32)
    v2 = jax.random.normal(k2v, (B2, D2), dtype=jnp.float32)
    out2 = ntxent_loss(a2, v2, tau, block_rows=8)
    jax.block_until_ready(out2)
    ref_loss2, ref_acc2 = _reference(a2, v2, tau)
    assert jnp.allclose(out2["loss"], ref_loss2, atol=1e-4, rtol=1e-4), (out2["loss"], ref_loss2)
    assert jnp.allclose(out2["acc"], ref_acc2, atol=1e-4, rtol=1e-4), (out2["acc"], ref_acc2)

    print("KERNEL_OK")
</pallas_src>

<mosaic_0001>
module attributes {stable_mosaic.version = 11 : i64} {
  func.func @_ntxent_kernel(%arg0: i32, %arg1: memref<1x1xf32, #tpu.memory_space<smem>>, %arg2: memref<8x32xf32, #tpu.memory_space<vmem>>, %arg3: memref<8x32xf32, #tpu.memory_space<any>>, %arg4: memref<1x1xf32, #tpu.memory_space<vmem>>, %arg5: memref<1x1xf32, #tpu.memory_space<vmem>>, %arg6: memref<8x32xf32, #tpu.memory_space<vmem>>, %arg7: memref<8x32xf32, #tpu.memory_space<vmem>>, %arg8: memref<!tpu.dma_semaphore, #tpu.memory_space<semaphore_mem>>, %arg9: memref<1x8xf32, #tpu.memory_space<vmem>>, %arg10: memref<1x1xf32, #tpu.memory_space<vmem>>, %arg11: memref<1x1xf32, #tpu.memory_space<vmem>>) attributes {dimension_semantics = [#tpu.dimension_semantics<arbitrary>], iteration_bounds = array<i64: 1>, scalar_prefetch = 0 : i64, scratch_operands = 6 : i64, tpu.core_type = #tpu.core_type<tc>, window_params = [{transform_indices = @transform_0, window_bounds = array<i64: 1, 1>}, {transform_indices = @transform_1, window_bounds = array<i64: 8, 32>}, {}, {pipeline_mode = #tpu.pipeline_mode<synchronous>, transform_indices = @transform_3, window_bounds = array<i64: 1, 1>}, {pipeline_mode = #tpu.pipeline_mode<synchronous>, transform_indices = @transform_4, window_bounds = array<i64: 1, 1>}]} {
    %c0 = arith.constant 0 : index
    %c0_0 = arith.constant 0 : index
    %0 = memref.load %arg1[%c0, %c0_0] : memref<1x1xf32, #tpu.memory_space<smem>>
    %cst = arith.constant 1.000000e+00 : f32
    %1 = arith.divf %cst, %0 : f32
    %c0_i32 = arith.constant 0 : i32
    %2 = arith.cmpi eq, %arg0, %c0_i32 : i32
    %3 = arith.extui %2 : i1 to i32
    %cst_1 = arith.constant 1.000000e-24 : f32
    %c0_i32_2 = arith.constant 0 : i32
    %4 = arith.cmpi ne, %3, %c0_i32_2 : i32
    scf.if %4 {
      %cst_33 = arith.constant 0.000000e+00 : f32
      %68 = vector.broadcast %cst_33 : f32 to vector<1x8xf32>
      %c0_34 = arith.constant 0 : index
      %c0_35 = arith.constant 0 : index
      %69 = vector.load %arg9[%c0_34, %c0_35] : memref<1x8xf32, #tpu.memory_space<vmem>>, vector<1x8xf32>
      tpu.vector_store %arg9[%c0_34, %c0_35], %68 {strides = array<i32>} : memref<1x8xf32, #tpu.memory_space<vmem>>, vector<1x8xf32>,
      %cst_36 = arith.constant 0.000000e+00 : f32
      %70 = vector.broadcast %cst_36 : f32 to vector<1x1xf32>
      %c0_37 = arith.constant 0 : index
      %c0_38 = arith.constant 0 : index
      %71 = vector.load %arg10[%c0_37, %c0_38] : memref<1x1xf32, #tpu.memory_space<vmem>>, vector<1x1xf32>
      tpu.vector_store %arg10[%c0_37, %c0_38], %70 {strides = array<i32>} : memref<1x1xf32, #tpu.memory_space<vmem>>, vector<1x1xf32>,
      %cst_39 = arith.constant 0.000000e+00 : f32
      %72 = vector.broadcast %cst_39 : f32 to vector<1x1xf32>
      %c0_40 = arith.constant 0 : index
      %c0_41 = arith.constant 0 : index
      %73 = vector.load %arg11[%c0_40, %c0_41] : memref<1x1xf32, #tpu.memory_space<vmem>>, vector<1x1xf32>
      tpu.vector_store %arg11[%c0_40, %c0_41], %72 {strides = array<i32>} : memref<1x1xf32, #tpu.memory_space<vmem>>, vector<1x1xf32>,
      %c0_i32_42 = arith.constant 0 : i32
      %c8_i32_43 = arith.constant 8 : i32
      %74 = arith.muli %c0_i32_42, %c8_i32_43 : i32
      %75 = tpu.assume_multiple %74, 8 : i32
      %c0_i32_44 = arith.constant 0 : i32
      %76 = tpu.memref_slice %arg3[%75, %c0_i32_44] : memref<8x32xf32, #tpu.memory_space<any>> -> memref<8x32xf32, #tpu.memory_space<any>>
      tpu.enqueue_dma source(%76 : memref<8x32xf32, #tpu.memory_space<any>>) target(%arg7 : memref<8x32xf32, #tpu.memory_space<vmem>>) target_semaphore(%arg8 : memref<!tpu.dma_semaphore, #tpu.memory_space<semaphore_mem>>)
      %c0_i32_45 = arith.constant 0 : i32
      %77 = tpu.memref_slice %arg3[%75, %c0_i32_45] : memref<8x32xf32, #tpu.memory_space<any>> -> memref<8x32xf32, #tpu.memory_space<any>>
      tpu.wait_dma2 semaphore(%arg8 : memref<!tpu.dma_semaphore, #tpu.memory_space<semaphore_mem>>) src(%77 : memref<8x32xf32, #tpu.memory_space<any>>) dst(%arg7 : memref<8x32xf32, #tpu.memory_space<vmem>>)
      %c0_46 = arith.constant 0 : index
      %c0_47 = arith.constant 0 : index
      %78 = vector.load %arg7[%c0_46, %c0_47] : memref<8x32xf32, #tpu.memory_space<vmem>>, vector<8x32xf32>
      %79 = arith.mulf %78, %78 : vector<8x32xf32>
      %cst_48 = arith.constant dense<0.000000e+00> : vector<8xf32>
      %80 = vector.multi_reduction <add>, %79, %cst_48 [1] : vector<8x32xf32> to vector<8xf32>
      %81 = vector.shape_cast %80 : vector<8xf32> to vector<8x1xf32>
      %82 = vector.broadcast %cst_1 : f32 to vector<8x1xf32>
      %83 = arith.maximumf %81, %82 : vector<8x1xf32>
      %84 = math.rsqrt %83 : vector<8x1xf32>
      %85 = vector.broadcast %84 : vector<8x1xf32> to vector<8x32xf32>
      %86 = arith.mulf %78, %85 : vector<8x32xf32>
      %87 = arith.index_cast %75 : i32 to index
      %c0_49 = arith.constant 0 : index
      %88 = vector.load %arg6[%87, %c0_49] : memref<8x32xf32, #tpu.memory_space<vmem>>, vector<8x32xf32>
      tpu.vector_store %arg6[%87, %c0_49], %86 {strides = array<i32>} : memref<8x32xf32, #tpu.memory_space<vmem>>, vector<8x32xf32>,
      %c1_i32 = arith.constant 1 : i32
    } else {
    }
    %c0_3 = arith.constant 0 : index
    %c0_4 = arith.constant 0 : index
    %5 = vector.load %arg2[%c0_3, %c0_4] : memref<8x32xf32, #tpu.memory_space<vmem>>, vector<8x32xf32>
    %6 = arith.mulf %5, %5 : vector<8x32xf32>
    %cst_5 = arith.constant dense<0.000000e+00> : vector<8xf32>
    %7 = vector.multi_reduction <add>, %6, %cst_5 [1] : vector<8x32xf32> to vector<8xf32>
    %8 = vector.shape_cast %7 : vector<8xf32> to vector<8x1xf32>
    %cst_6 = arith.constant 1.000000e-24 : f32
    %9 = vector.broadcast %cst_6 : f32 to vector<8x1xf32>
    %10 = arith.maximumf %8, %9 : vector<8x1xf32>
    %11 = math.rsqrt %10 : vector<8x1xf32>
    %12 = vector.broadcast %11 : vector<8x1xf32> to vector<8x32xf32>
    %13 = arith.mulf %5, %12 : vector<8x32xf32>
    %14 = vector.broadcast %1 : f32 to vector<8x32xf32>
    %15 = arith.mulf %13, %14 : vector<8x32xf32>
    %c8_i32 = arith.constant 8 : i32
    %16 = arith.muli %arg0, %c8_i32 : i32
    %17 = tpu.assume_multiple %16, 8 : i32
    %18 = arith.index_cast %17 : i32 to index
    %c0_7 = arith.constant 0 : index
    %19 = vector.load %arg6[%18, %c0_7] : memref<8x32xf32, #tpu.memory_space<vmem>>, vector<8x32xf32>
    %20 = arith.mulf %15, %19 : vector<8x32xf32>
    %cst_8 = arith.constant dense<0.000000e+00> : vector<8xf32>
    %21 = vector.multi_reduction <add>, %20, %cst_8 [1] : vector<8x32xf32> to vector<8xf32>
    %22 = vector.shape_cast %21 : vector<8xf32> to vector<8x1xf32>
    %c0_9 = arith.constant 0 : index
    %c0_10 = arith.constant 0 : index
    %23 = vector.load %arg6[%c0_9, %c0_10] : memref<8x32xf32, #tpu.memory_space<vmem>>, vector<8x32xf32>
    %cst_11 = arith.constant dense<0.000000e+00> : vector<8x8xf32>
    %24 = tpu.matmul %15, %23, %cst_11 {dimension_numbers = #tpu.dot_dimension_numbers<[1], [1], [0], [0], [0, 0, 1, 0], [], []>} : vector<8x32xf32>, vector<8x32xf32>, vector<8x8xf32> -> vector<8x8xf32>
    %25 = vector.broadcast %1 : f32 to vector<8x8xf32>
    %26 = arith.subf %24, %25 : vector<8x8xf32>
    %27 = math.exp %26 : vector<8x8xf32>
    %cst_12 = arith.constant dense<0.000000e+00> : vector<8xf32>
    %28 = vector.multi_reduction <add>, %27, %cst_12 [1] : vector<8x8xf32> to vector<8xf32>
    %29 = vector.shape_cast %28 : vector<8xf32> to vector<8x1xf32>
    %30 = math.log %29 : vector<8x1xf32>
    %31 = vector.broadcast %1 : f32 to vector<8x1xf32>
    %32 = arith.addf %31, %30 : vector<8x1xf32>
    %c0_13 = arith.constant 0 : index
    %c0_14 = arith.constant 0 : index
    %33 = vector.load %arg10[%c0_13, %c0_14] : memref<1x1xf32, #tpu.memory_space<vmem>>, vector<1x1xf32>
    %cst_15 = arith.constant 2.000000e+00 : f32
    %34 = vector.broadcast %cst_15 : f32 to vector<8x1xf32>
    %35 = arith.mulf %34, %22 : vector<8x1xf32>
    %36 = arith.subf %32, %35 : vector<8x1xf32>
    %37 = vector.shape_cast %36 : vector<8x1xf32> to vector<1x8x1xf32>
    %cst_16 = arith.constant dense<0.000000e+00> : vector<1xf32>
    %38 = vector.multi_reduction <add>, %37, %cst_16 [1, 2] : vector<1x8x1xf32> to vector<1xf32>
    %39 = vector.shape_cast %38 : vector<1xf32> to vector<1x1x1xf32>
    %40 = vector.extract %39[0, 0, 0] : f32 from vector<1x1x1xf32>
    %41 = vector.broadcast %40 : f32 to vector<1x1xf32>
    %42 = arith.addf %33, %41 : vector<1x1xf32>
    %c0_17 = arith.constant 0 : index
    %c0_18 = arith.constant 0 : index
    %43 = vector.load %arg10[%c0_17, %c0_18] : memref<1x1xf32, #tpu.memory_space<vmem>>, vector<1x1xf32>
    tpu.vector_store %arg10[%c0_17, %c0_18], %42 {strides = array<i32>} : memref<1x1xf32, #tpu.memory_space<vmem>>, vector<1x1xf32>,
    %c0_19 = arith.constant 0 : index
    %c0_20 = arith.constant 0 : index
    %44 = vector.load %arg9[%c0_19, %c0_20] : memref<1x8xf32, #tpu.memory_space<vmem>>, vector<1x8xf32>
    %cst_21 = arith.constant dense<0.000000e+00> : vector<8xf32>
    %45 = vector.multi_reduction <add>, %27, %cst_21 [0] : vector<8x8xf32> to vector<8xf32>
    %46 = vector.shape_cast %45 : vector<8xf32> to vector<1x8xf32>
    %47 = arith.addf %44, %46 : vector<1x8xf32>
    %c0_22 = arith.constant 0 : index
    %c0_23 = arith.constant 0 : index
    %48 = vector.load %arg9[%c0_22, %c0_23] : memref<1x8xf32, #tpu.memory_space<vmem>>, vector<1x8xf32>
    tpu.vector_store %arg9[%c0_22, %c0_23], %47 {strides = array<i32>} : memref<1x8xf32, #tpu.memory_space<vmem>>, vector<1x8xf32>,
    %cst_24 = arith.constant dense<0xFF800000> : vector<8xf32>
    %49 = vector.multi_reduction <maximumf>, %24, %cst_24 [1] : vector<8x8xf32> to vector<8xf32>
    %50 = vector.shape_cast %49 : vector<8xf32> to vector<8x1xf32>
    %cst_25 = arith.constant 9.99999974E-5 : f32
    %51 = arith.mulf %cst_25, %1 : f32
    %c0_26 = arith.constant 0 : index
    %c0_27 = arith.constant 0 : index
    %52 = vector.load %arg11[%c0_26, %c0_27] : memref<1x1xf32, #tpu.memory_space<vmem>>, vector<1x1xf32>
    %53 = vector.broadcast %51 : f32 to vector<8x1xf32>
    %54 = arith.addf %22, %53 : vector<8x1xf32>
    %55 = arith.cmpf oge, %54, %50 : vector<8x1xf32>
    %56 = arith.extui %55 : vector<8x1xi1> to vector<8x1xi32>
    %57 = arith.sitofp %56 : vector<8x1xi32> to vector<8x1xf32>
    %58 = vector.shape_cast %57 : vector<8x1xf32> to vector<1x8x1xf32>
    %cst_28 = arith.constant dense<0.000000e+00> : vector<1xf32>
    %59 = vector.multi_reduction <add>, %58, %cst_28 [1, 2] : vector<1x8x1xf32> to vector<1xf32>
    %60 = vector.shape_cast %59 : vector<1xf32> to vector<1x1x1xf32>
    %61 = vector.extract %60[0, 0, 0] : f32 from vector<1x1x1xf32>
    %62 = vector.broadcast %61 : f32 to vector<1x1xf32>
    %63 = arith.addf %52, %62 : vector<1x1xf32>
    %c0_29 = arith.constant 0 : index
    %c0_30 = arith.constant 0 : index
    %64 = vector.load %arg11[%c0_29, %c0_30] : memref<1x1xf32, #tpu.memory_space<vmem>>, vector<1x1xf32>
    tpu.vector_store %arg11[%c0_29, %c0_30], %63 {strides = array<i32>} : memref<1x1xf32, #tpu.memory_space<vmem>>, vector<1x1xf32>,
    %c0_i32_31 = arith.constant 0 : i32
    %65 = arith.cmpi eq, %arg0, %c0_i32_31 : i32
    %66 = arith.extui %65 : i1 to i32
    %c0_i32_32 = arith.constant 0 : i32
    %67 = arith.cmpi ne, %66, %c0_i32_32 : i32
    scf.if %67 {
      %c0_33 = arith.constant 0 : index
      %c0_34 = arith.constant 0 : index
      %68 = vector.load %arg9[%c0_33, %c0_34] : memref<1x8xf32, #tpu.memory_space<vmem>>, vector<1x8xf32>
      %69 = math.log %68 : vector<1x8xf32>
      %70 = vector.broadcast %1 : f32 to vector<1x8xf32>
      %71 = arith.addf %70, %69 : vector<1x8xf32>
      %72 = vector.shape_cast %71 : vector<1x8xf32> to vector<1x1x8xf32>
      %cst_35 = arith.constant dense<0.000000e+00> : vector<1xf32>
      %73 = vector.multi_reduction <add>, %72, %cst_35 [1, 2] : vector<1x1x8xf32> to vector<1xf32>
      %74 = vector.shape_cast %73 : vector<1xf32> to vector<1x1x1xf32>
      %75 = vector.extract %74[0, 0, 0] : f32 from vector<1x1x1xf32>
      %76 = vector.broadcast %75 : f32 to vector<1x1xf32>
      %c0_36 = arith.constant 0 : index
      %c0_37 = arith.constant 0 : index
      %77 = vector.load %arg10[%c0_36, %c0_37] : memref<1x1xf32, #tpu.memory_space<vmem>>, vector<1x1xf32>
      %78 = arith.addf %77, %76 : vector<1x1xf32>
      %cst_38 = arith.constant 5.000000e-01 : f32
      %79 = vector.broadcast %cst_38 : f32 to vector<1x1xf32>
      %80 = arith.mulf %79, %78 : vector<1x1xf32>
      %cst_39 = arith.constant 1.250000e-01 : f32
      %81 = vector.broadcast %cst_39 : f32 to vector<1x1xf32>
      %82 = arith.mulf %80, %81 : vector<1x1xf32>
      %c0_40 = arith.constant 0 : index
      %c0_41 = arith.constant 0 : index
      %83 = vector.load %arg4[%c0_40, %c0_41] : memref<1x1xf32, #tpu.memory_space<vmem>>, vector<1x1xf32>
      tpu.vector_store %arg4[%c0_40, %c0_41], %82 {strides = array<i32>} : memref<1x1xf32, #tpu.memory_space<vmem>>, vector<1x1xf32>,
      %c0_42 = arith.constant 0 : index
      %c0_43 = arith.constant 0 : index
      %84 = vector.load %arg11[%c0_42, %c0_43] : memref<1x1xf32, #tpu.memory_space<vmem>>, vector<1x1xf32>
      %cst_44 = arith.constant 1.000000e+02 : f32
      %85 = vector.broadcast %cst_44 : f32 to vector<1x1xf32>
      %86 = arith.mulf %85, %84 : vector<1x1xf32>
      %cst_45 = arith.constant 1.250000e-01 : f32
      %87 = vector.broadcast %cst_45 : f32 to vector<1x1xf32>
      %88 = arith.mulf %86, %87 : vector<1x1xf32>
      %c0_46 = arith.constant 0 : index
      %c0_47 = arith.constant 0 : index
      %89 = vector.load %arg5[%c0_46, %c0_47] : memref<1x1xf32, #tpu.memory_space<vmem>>, vector<1x1xf32>
      tpu.vector_store %arg5[%c0_46, %c0_47], %88 {strides = array<i32>} : memref<1x1xf32, #tpu.memory_space<vmem>>, vector<1x1xf32>,
    } else {
    }
    return
  }
  func.func @transform_0(%arg0: i32) -> (i32, i32) {
    %c0_i32 = arith.constant 0 : i32
    %c0_i32_0 = arith.constant 0 : i32
    %c0_i32_1 = arith.constant 0 : i32
    return %c0_i32, %c0_i32_0 : i32, i32
  }
  func.func @transform_1(%arg0: i32) -> (i32, i32) {
    %c0_i32 = arith.constant 0 : i32
    %c0_i32_0 = arith.constant 0 : i32
    return %arg0, %c0_i32 : i32, i32
  }
  func.func @transform_3(%arg0: i32) -> (i32, i32) {
    %c0_i32 = arith.constant 0 : i32
    %c0_i32_0 = arith.constant 0 : i32
    %c0_i32_1 = arith.constant 0 : i32
    return %c0_i32, %c0_i32_0 : i32, i32
  }
  func.func @transform_4(%arg0: i32) -> (i32, i32) {
    %c0_i32 = arith.constant 0 : i32
    %c0_i32_0 = arith.constant 0 : i32
    %c0_i32_1 = arith.constant 0 : i32
    return %c0_i32, %c0_i32_0 : i32, i32
  }
}

</mosaic_0001>

<llo_original>
// kernel: tpu_custom_call.1
$region0: #{tpu_custom_call.1}
  #allocation0 [shape = 'u32[]', space=smem, size = 0x4, offset = 0x4, fixed_abs, tag = 'smem constant byte address 0x4 - core index']
  #allocation1 [shape = 'u32[144,128]{1,0:T(1,128)}', space=vmem, size = 0x12000, scoped, tag = 'internal scratch']
  #allocation2 [shape = 'f32[8,32]{1,0:T(8,128)}', space=vmem, size = 0x1000, scoped, tag = 'scratch operand']
  #allocation3 [shape = 'f32[8,32]{1,0:T(8,128)}', space=vmem, size = 0x1000, scoped, tag = 'scratch operand']
  #allocation4 [shape = 's32[1]{0}', space=sflag, size = 0x4, scoped, tag = 'scratch operand']
  #allocation5 [shape = 'f32[1,8]{1,0:T(1,128)}', space=vmem, size = 0x200, scoped, tag = 'scratch operand']
  #allocation6 [shape = 'f32[1,1]{1,0:T(1,128)}', space=vmem, size = 0x200, scoped, tag = 'scratch operand']
  #allocation7 [shape = 'f32[1,1]{1,0:T(1,128)}', space=vmem, size = 0x200, scoped, tag = 'scratch operand']
  #allocation8 [shape = 'f32[1,1]{1,0:T(1,128)S(6)}', space=smem, size = 0x200, scoped, tag = 'scoped memory for tpu_custom_call.1']
  #allocation15 [shape = 's32[]', space=sflag, size = 0x4, offset = 0, fixed_abs, tag = 'sflag constant byte address 0x0 - dummy sync flag']
  #allocation16 [shape = 's32[]', space=sflag, size = 0x4, offset = 0, fixed_abs, tag = 'sflag constant byte address 0x0 - dummy sync flag']
  #allocation17 [shape = 'u32[]', space=smem, size = 0x4, offset = 0x44, fixed_abs, tag = 'smem constant byte address 0x44 - assertion arg 0']
  #allocation18 [shape = 'u32[]', space=smem, size = 0x4, offset = 0x48, fixed_abs, tag = 'smem constant byte address 0x48 - assertion arg 1']
  %s0 = inlined_call_operand.<no memory space> [shape: f32[1,1], index: 0, kind: input, shape index: {}]
  %s1 = inlined_call_operand.hbm [shape: f32[8,32], index: 1, kind: input, shape index: {}]
  %s2 = inlined_call_operand.hbm [shape: f32[8,32], index: 2, kind: input, shape index: {}]
  %s3 = inlined_call_operand.hbm [shape: f32[1,1], index: 3, kind: output, shape index: {0}]
  %s4 = inlined_call_operand.hbm [shape: f32[1,1], index: 4, kind: output, shape index: {1}]
  %5 = xla_tuple %s3, %s4
  %s6 = sld [smem:[#allocation0]]
  $region42: #{tpu_custom_call.1} parent=0
    _
  %s8 = ssub.s32 1, %s6
  %s9 = scalar_select 0, %s8, %s6
  %10 = sst [smem:[#allocation8]] %s0
  $region1: #{tpu_custom_call.1} parent=0
    #allocation9 [shape = 'u8[4096]{0}', space=vmem, size = 0x1000, scoped, tag = 'input window, operand 1, single buffered']
    #allocation10 [shape = 's32[1]{0}', space=sflag, size = 0x4, scoped, tag = 'scoped memory for tpu_custom_call.1']
    #allocation11 [shape = 's32[1]{0}', space=sflag, size = 0x4, scoped, tag = 'scoped memory for tpu_custom_call.1']
    #allocation12 [shape = 'u8[512]{0}', space=vmem, size = 0x400, scoped, tag = 'output window, operand 0, single buffered']
    #allocation13 [shape = 'u8[512]{0}', space=vmem, size = 0x400, scoped, tag = 'output window, operand 1, single buffered']
    #allocation14 [shape = 's32[1]{0}', space=sflag, size = 0x4, scoped, tag = 'scoped memory for tpu_custom_call.1']
    %11 = vsyncpa [#allocation10], 0
    %12 = vsyncpa [#allocation11], 0
    %13 = vsyncpa [#allocation14], 0
    // Predicated region
    $region2: #{tpu_custom_call.1} parent=1 // pred_check
      _
    $region3: #{tpu_custom_call.1} parent=1 // pred_check_branch
      %15 = sbr.rel (0) target = $region5
    $region4: #{tpu_custom_call.1} parent=1 // pred_region
      _
    $region5: #{tpu_custom_call.1} parent=1 // pred_fallthru
      _
    // Predicated region
    $region6: #{tpu_custom_call.1} parent=1 // pred_check
      _
    $region7: #{tpu_custom_call.1} parent=1 // pred_check_branch
      %17 = sbr.rel (0) target = $region9
    $region8: #{tpu_custom_call.1} parent=1 // pred_region
      %s19 = ssub.s32 128, 128
      %20 = vsyncadd [#allocation10], %s19
      %s22 = sshll.u32 [#allocation9], 4
      %s23 = int_to_ptr.vmem [resolvable:$true] %s22
      %25 = dma.hbm_to_vmem [thread:$0]  %s1, 128, %s23, [#allocation10]
    $region9: #{tpu_custom_call.1} parent=1 // pred_fallthru
      _
    // Predicated region
    $region10: #{tpu_custom_call.1} parent=1 // pred_check
      _
    $region11: #{tpu_custom_call.1} parent=1 // pred_check_branch
      %27 = sbr.rel (0) target = $region13
    $region12: #{tpu_custom_call.1} parent=1 // pred_region
      %28 = dma.done [#allocation10], 128
    $region13: #{tpu_custom_call.1} parent=1 // pred_fallthru
      _
    %s29 = sld [smem:[#allocation8]]
    %v30 = vstv %s29
    %v31 = vrcp.pop %v30
    %s32 = vtos %v31
    %p33 = scmp.eq.s32.totalorder 0, 0
    // Predicated region
    $region14: #{tpu_custom_call.1} parent=1 // pred_check
      %p34 = pneg %p33
    $region15: #{tpu_custom_call.1} parent=1 // pred_check_branch
      %36 = sbr.rel (%p34) target = $region17
    $region16: #{tpu_custom_call.1} parent=1 // pred_region
      %vm37 = vcmask 57344
      %38 = vst.msk [vmem:[#allocation5] sm:$0x1] %vm37, 0.0
      %vm39 = vcmask 0
      %40 = vst.msk [vmem:[#allocation6] sm:$0x1] %vm39, 0.0
      %41 = vst.msk [vmem:[#allocation7] sm:$0x1] %vm39, 0.0
      // Predicated region
      $region18: #{tpu_custom_call.1} parent=16 // pred_check
        _
      $region19: #{tpu_custom_call.1} parent=16 // pred_check_branch
        %43 = sbr.rel target = $region21
      $region20: #{tpu_custom_call.1} parent=16 // pred_region
        %44 = sst [smem:[#allocation17]] [#allocation16]
        %45 = sst [smem:[#allocation18]] [#allocation15]
      $region21: #{tpu_custom_call.1} parent=16 // pred_fallthru
        _
      %47 = shalt.err (0)
      %s49 = sshll.u32 [#allocation3], 4
      %s50 = int_to_ptr.vmem [resolvable:$true] %s49
      %52 = dma.hbm_to_vmem [thread:$0]  %s2, 128, %s50, [#allocation4]
      %s53 = smul.u32 8, 1
      %s54 = sshll.u32 %s53, 4
      %55 = dma.done [#allocation4], %s54
      %v56 = vld [vmem:[#allocation3] sm:$0xff]
      %v57 = vmul.f32 %v56, %v56
      %vm58 = vcmask 261120
      %v59 = vsel %vm58, %v57, 0.0
      %60 = vadd.xlane.f32.xlu0 %v59
      %v61 = vpop.xlane.xlu0 %60
      %v62 = vmax.f32 %v61, 1e-24
      %v63 = vrsqrt.pop %v62
      %v64 = vmul.f32 %v56, %v63
      %65 = vst.msk [vmem:[#allocation2] sm:$0xff] %vm58, %v64
    $region17: #{tpu_custom_call.1} parent=1 // pred_fallthru
      _
    %v66 = vld [vmem:[#allocation9] sm:$0xff]
    %v67 = vmul.f32 %v66, %v66
    %vm68 = vcmask 261120
    %v69 = vsel %vm68, %v67, 0.0
    %70 = vadd.xlane.f32.xlu0 %v69
    %v71 = vpop.xlane.xlu0 %70
    %v72 = vmax.f32 %v71, 1e-24
    %v73 = vrsqrt.pop %v72
    %v74 = vmul.f32 %v66, %v73
    %v75 = vstv %s32
    %v76 = vmul.f32 %v74, %v75
    %s77 = smul.u32 0, 8
    %s78 = scalar_lea.vmem [#allocation2], %s77
    %v79 = vld [vmem:[%s78] sm:$0xff]
    %v80 = vmul.f32 %v76, %v79
    %v81 = vsel %vm68, %v80, 0.0
    %82 = vadd.xlane.f32.xlu0 %v81
    %v83 = vpop.xlane.xlu0 %82
    %v84 = vld [vmem:[#allocation2] sm:$0xff]
    %v86 = vsel %vm68, %v76, 0
    %v89 = vsel %vm68, %v84, 0
    %91 = vmatprep.subr.mxu0 0.0
    %92 = vmatpush1.xpose.msra.mxu0 0.0
    %93 = vmatprep.subr.mxu0 0.0
    %94 = vmatpush1.xpose.msra.mxu0 0.0
    %95 = vmatprep.subr.mxu0 0.0
    %96 = vmatpush1.xpose.msra.mxu0 0.0
    %97 = vmatprep.subr.mxu0 0.0
    %98 = vmatpush1.xpose.msra.mxu0 0.0
    %99 = vmatprep.subr.mxu0 0.0
    %100 = vmatpush1.xpose.msra.mxu0 0.0
    %101 = vmatprep.subr.mxu0 0.0
    %102 = vmatpush1.xpose.msra.mxu0 0.0
    %103 = vmatprep.subr.mxu0 0.0
    %104 = vmatpush1.xpose.msra.mxu0 0.0
    %105 = vmatprep.subr.mxu0 0.0
    %106 = vmatpush1.xpose.msra.mxu0 0.0
    %107 = vmatprep.subr.mxu0 0.0
    %108 = vmatpush1.xpose.msra.mxu0 0.0
    %109 = vmatprep.subr.mxu0 0.0
    %110 = vmatpush1.xpose.msra.mxu0 0.0
    %111 = vmatprep.subr.mxu0 0.0
    %112 = vmatpush1.xpose.msra.mxu0 0.0
    %113 = vmatprep.subr.mxu0 0.0
    %114 = vmatpush1.xpose.msra.mxu0 0.0
    %115 = vmatprep.subr.mxu0 0.0
    %116 = vmatpush1.xpose.msra.mxu0 0.0
    %117 = vmatprep.subr.mxu0 0.0
    %118 = vmatpush1.xpose.msra.mxu0 0.0
    %119 = vmatprep.subr.mxu0 0.0
    %120 = vmatpush1.xpose.msra.mxu0 0.0
    %121 = vmatprep.subr.mxu0 0.0
    %122 = vmatpush1.xpose.msra.mxu0 %v89
    %123 = vmatprep.subr.mxu0 0.0
    %124 = vmatpush2.xpose.msra.mxu0 0.0
    %125 = vmatprep.subr.mxu0 0.0
    %126 = vmatpush2.xpose.msra.mxu0 0.0
    %127 = vmatprep.subr.mxu0 0.0
    %128 = vmatpush2.xpose.msra.mxu0 0.0
    %129 = vmatprep.subr.mxu0 0.0
    %130 = vmatpush2.xpose.msra.mxu0 0.0
    %131 = vmatprep.subr.mxu0 0.0
    %132 = vmatpush2.xpose.msra.mxu0 0.0
    %133 = vmatprep.subr.mxu0 0.0
    %134 = vmatpush2.xpose.msra.mxu0 0.0
    %135 = vmatprep.subr.mxu0 0.0
    %136 = vmatpush2.xpose.msra.mxu0 0.0
    %137 = vmatprep.subr.mxu0 0.0
    %138 = vmatpush2.xpose.msra.mxu0 0.0
    %139 = vmatprep.subr.mxu0 0.0
    %140 = vmatpush2.xpose.msra.mxu0 0.0
    %141 = vmatprep.subr.mxu0 0.0
    %142 = vmatpush2.xpose.msra.mxu0 0.0
    %143 = vmatprep.subr.mxu0 0.0
    %144 = vmatpush2.xpose.msra.mxu0 0.0
    %145 = vmatprep.subr.mxu0 0.0
    %146 = vmatpush2.xpose.msra.mxu0 0.0
    %147 = vmatprep.subr.mxu0 0.0
    %148 = vmatpush2.xpose.msra.mxu0 0.0
    %149 = vmatprep.subr.mxu0 0.0
    %150 = vmatpush2.xpose.msra.mxu0 0.0
    %151 = vmatprep.subr.mxu0 0.0
    %152 = vmatpush2.xpose.msra.mxu0 0.0
    %153 = vmatprep.subr.mxu0 0.0
    %154 = vmatpush2.xpose.msra.mxu0 0.0
    %155 = vmatprep.mubr.f32.mxu0 0.0
    %156 = vmatmul.mubr.f32.gmra.mxu0 %v86
    %v157 = vpop.f32.mrf.mxu0
    %v158 = vadd.f32 0.0, %v157
    %v159 = vpop.f32.mrf.mxu0
    %160 = vdwg.mxu0
    %v161 = vsub.f32 %v158, %v75
    %v162 = vmul.f32 %v161, 1.442695
    %v163 = vpow.pop %v162
    %vm164 = vcmask 64512
    %v165 = vsel %vm164, %v163, 0.0
    %166 = vadd.xlane.f32.xlu0 %v165
    %v167 = vpop.xlane.xlu0 %166
    %v168 = vlog2.pop %v167
    %v169 = vmul.f32 %v168, 0.6931472
    %v170 = vadd.f32 %v75, %v169
    %v171 = vld [vmem:[#allocation6] sm:$0x1]
    %v172 = vmul.f32 %v83, 2.0
    %v173 = vsub.f32 %v170, %v172
    %vm174 = vcmask 7168
    %v175 = vsel %vm174, %v173, 0.0
    %176 = vadd.xlane.f32.xlu0 %v175
    %v177 = vpop.xlane.xlu0 %176
    %v178 = vrot.slane %v177, 4
    %v179 = vadd.f32 %v177, %v178
    %v180 = vrot.slane %v179, 2
    %v181 = vadd.f32 %v179, %v180
    %v182 = vrot.slane %v181, 1
    %v183 = vadd.f32 %v181, %v182
    %s184 = vtos %v183
    %v185 = vstv %s184
    %v186 = vadd.f32 %v171, %v185
    %vm187 = vcmask 0
    %188 = vst.msk [vmem:[#allocation6] sm:$0x1] %vm187, %v186
    %v189 = vld [vmem:[#allocation5] sm:$0x1]
    %v190 = vrot.slane %v165, 4
    %v191 = vadd.f32 %v165, %v190
    %v192 = vrot.slane %v191, 2
    %v193 = vadd.f32 %v191, %v192
    %v194 = vrot.slane %v193, 1
    %v195 = vadd.f32 %v193, %v194
    %v196 = vadd.f32 %v189, %v195
    %vm197 = vcmask 57344
    %198 = vst.msk [vmem:[#allocation5] sm:$0x1] %vm197, %v196
    %v199 = vsel %vm164, %v158, -inf
    %200 = vmax.xlane.f32.xlu0 %v199
    %v201 = vpop.xlane.xlu0 %200
    %s202 = smul.f32 %s32, 0.0001
    %v203 = vld [vmem:[#allocation7] sm:$0x1]
    %v204 = vstv %s202
    %v205 = vadd.f32 %v83, %v204
    %vm206 = vcmp.ge.f32.partialorder %v205, %v201
    %v207 = vsel %vm206, 1, 0
    %v208 = vcvt.s32.f32 %v207
    %v209 = vsel %vm174, %v208, 0.0
    %210 = vadd.xlane.f32.xlu0 %v209
    %v211 = vpop.xlane.xlu0 %210
    %v212 = vrot.slane %v211, 4
    %v213 = vadd.f32 %v211, %v212
    %v214 = vrot.slane %v213, 2
    %v215 = vadd.f32 %v213, %v214
    %v216 = vrot.slane %v215, 1
    %v217 = vadd.f32 %v215, %v216
    %s218 = vtos %v217
    %v219 = vstv %s218
    %v220 = vadd.f32 %v203, %v219
    %221 = vst.msk [vmem:[#allocation7] sm:$0x1] %vm187, %v220
    // Predicated region
    $region22: #{tpu_custom_call.1} parent=1 // pred_check
      %p222 = pneg %p33
    $region23: #{tpu_custom_call.1} parent=1 // pred_check_branch
      %224 = sbr.rel (%p222) target = $region25
    $region24: #{tpu_custom_call.1} parent=1 // pred_region
      %v225 = vld [vmem:[#allocation5] sm:$0x1]
      %v226 = vlog2.pop %v225
      %v227 = vmul.f32 %v226, 0.6931472
      %v228 = vadd.f32 %v75, %v227
      %v229 = vsel %vm197, %v228, 0.0
      %230 = vadd.xlane.f32.xlu0 %v229
      %v231 = vpop.xlane.xlu0 %230
      %v232 = vrot.slane %v231, 4
      %v233 = vadd.f32 %v231, %v232
      %v234 = vrot.slane %v233, 2
      %v235 = vadd.f32 %v233, %v234
      %v236 = vrot.slane %v235, 1
      %v237 = vadd.f32 %v235, %v236
      %s238 = vtos %v237
      %v239 = vstv %s238
      %v240 = vld [vmem:[#allocation6] sm:$0x1]
      %v241 = vadd.f32 %v240, %v239
      %v242 = vmul.f32 %v241, 0.5
      %v243 = vmul.f32 %v242, 0.125
      %244 = vst.msk [vmem:[#allocation12] sm:$0x1] %vm187, %v243
      %v245 = vld [vmem:[#allocation7] sm:$0x1]
      %v246 = vmul.f32 %v245, 100.0
      %v247 = vmul.f32 %v246, 0.125
      %248 = vst.msk [vmem:[#allocation13] sm:$0x1] %vm187, %v247
    $region25: #{tpu_custom_call.1} parent=1 // pred_fallthru
      _
    // Predicated region
    $region26: #{tpu_custom_call.1} parent=1 // pred_check
      _
    $region27: #{tpu_custom_call.1} parent=1 // pred_check_branch
      %250 = sbr.rel (0) target = $region29
    $region28: #{tpu_custom_call.1} parent=1 // pred_region
      %s252 = ssub.s32 16, 16
      %253 = vsyncadd [#allocation11], %s252
      %s255 = sshll.u32 [#allocation12], 4
      %s256 = int_to_ptr.vmem [resolvable:$true] %s255
      %258 = dma.vmem_to_hbm [thread:$0]  %s256, 16, %s3, [#allocation11]
    $region29: #{tpu_custom_call.1} parent=1 // pred_fallthru
      _
    // Predicated region
    $region30: #{tpu_custom_call.1} parent=1 // pred_check
      _
    $region31: #{tpu_custom_call.1} parent=1 // pred_check_branch
      %260 = sbr.rel (0) target = $region33
    $region32: #{tpu_custom_call.1} parent=1 // pred_region
      %s262 = ssub.s32 16, 16
      %263 = vsyncadd [#allocation14], %s262
      %s265 = sshll.u32 [#allocation13], 4
      %s266 = int_to_ptr.vmem [resolvable:$true] %s265
      %268 = dma.vmem_to_hbm [thread:$0]  %s266, 16, %s4, [#allocation14]
    $region33: #{tpu_custom_call.1} parent=1 // pred_fallthru
      _
    // Predicated region
    $region34: #{tpu_custom_call.1} parent=1 // pred_check
      _
    $region35: #{tpu_custom_call.1} parent=1 // pred_check_branch
      %270 = sbr.rel (0) target = $region37
    $region36: #{tpu_custom_call.1} parent=1 // pred_region
      %271 = dma.done [#allocation11], 16
    $region37: #{tpu_custom_call.1} parent=1 // pred_fallthru
      _
    // Predicated region
    $region38: #{tpu_custom_call.1} parent=1 // pred_check
      _
    $region39: #{tpu_custom_call.1} parent=1 // pred_check_branch
      %273 = sbr.rel (0) target = $region41
    $region40: #{tpu_custom_call.1} parent=1 // pred_region
      %274 = dma.done [#allocation14], 16
    $region41: #{tpu_custom_call.1} parent=1 // pred_fallthru
      _
    %275 = vsyncpa [#allocation10], 1
    %276 = vsyncpa [#allocation11], 1
    %277 = vsyncpa [#allocation14], 1
  %278 = vsyncmov [#allocation4]
  %s279 = vpop.sfrf %278
  %p280 = scmp.eq.s32.totalorder %s279, 0
  %p281 = pneg %p280
  %283 = shalt.err (%p281)

</llo_original>
